<compile_context>
chip_gen: v7x
topology: tpu7x:2x2x1
jax: 0.10.0
libtpu: 0.0.40
codegen_flags: <defaults>
</compile_context>

<pallas_src>
import functools

import jax
import jax.numpy as jnp
from jax import lax
from jax.experimental import pallas as pl
from jax.experimental.pallas import tpu as pltpu


# ---------------------------------------------------------------------------
# Tile-size selection
# ---------------------------------------------------------------------------
# Budget for ONE input buffer; Pallas double-buffers, so real usage is ~2x.
_DEFAULT_BLOCK_BYTES = 6 * 1024 * 1024
# Explicit scoped-VMEM limit: covers the double-buffered input + f32
# accumulator + output block with headroom, and stays under v7x's 64 MiB
# physical VMEM (v5e/v6e have 128 MiB physical).
_TEXT_VMEM_LIMIT_BYTES = 40 * 1024 * 1024


def _pick_tb(batch: int, itemsize: int) -> int:
    """Rows per grid step: full batch if small, else a multiple-of-8 tile."""
    cap = 16 if itemsize <= 2 else 8
    return batch if batch <= cap else cap


def _pick_d_tile(d: int, batch_grid: int) -> int:
    """Split D into a second parallel axis when the batch axis alone can't
    feed both v7x TensorCores.  Only clean multiples of 128 lanes."""
    if batch_grid >= 2 or d % 256 != 0:
        return d
    return d // 2


def _pick_s_tile(seq: int, tb: int, d_tile: int, itemsize: int,
                 budget: int) -> int:
    """Sequence tile: whole sequence if it fits the budget, else a multiple
    of 8; prefer a tile that divides S so the tail mask is never needed."""
    if tb * seq * d_tile * itemsize <= budget:
        return seq
    max_tile = budget // (tb * d_tile * itemsize)
    max_tile = max(8, (max_tile // 8) * 8)
    max_tile = min(max_tile, seq)
    for cand in range(max_tile, max(8, max_tile // 2) - 1, -8):
        if seq % cand == 0:
            return cand
    return max_tile


# ---------------------------------------------------------------------------
# Kernels
# ---------------------------------------------------------------------------
def _text_pool_kernel(tok_ref, out_ref, acc_ref, *, inv_s, s_tile, seq_len):
    """Mean over the sequence axis, tiled over (batch, hidden, seq).

    grid = (batch, d, seq); the seq axis is last / "arbitrary" and the f32
    accumulator + output block are resident across it.
    """
    s_idx = pl.program_id(2)
    last = pl.num_programs(2) - 1
    need_mask = (seq_len % s_tile) != 0  # trace-time constant

    @pl.when(s_idx == 0)
    def _():
        acc_ref[...] = jnp.zeros_like(acc_ref)

    if need_mask:
        # Unmasked fast path on every tile except the last one.
        @pl.when(s_idx != last)
        def _():
            acc_ref[...] += jnp.sum(tok_ref[...], axis=1, dtype=jnp.float32)

        # Only the last tile pays for the iota/compare/select.
        @pl.when(s_idx == last)
        def _():
            tok = tok_ref[...]
            offs = s_idx * s_tile + lax.broadcasted_iota(jnp.int32, tok.shape, 1)
            masked = jnp.where(offs < seq_len, tok, 0.0)
            acc_ref[...] += jnp.sum(masked, axis=1, dtype=jnp.float32)
    else:
        acc_ref[...] += jnp.sum(tok_ref[...], axis=1, dtype=jnp.float32)

    @pl.when(s_idx == last)
    def _():
        out_ref[...] = (acc_ref[...] * inv_s).astype(out_ref.dtype)


def _leading_token_pool_kernel(tok_hbm, out_ref, buf_ref, sem_ref, *,
                               tb, n_tok, n_full, tail, avg):
    """img / audio pooling.

    `tok_hbm` is the full [B, S, D] tensor left in HBM (pl.ANY); only the
    (rows, n_tok, D) window actually read is DMA'd into VMEM, so no extra
    HBM round trip for a wrapper-side slice.
    """
    b = pl.program_id(0)

    def fetch(row0, rows, dst):
        cp = pltpu.make_async_copy(
            tok_hbm.at[pl.ds(row0, rows), pl.ds(0, n_tok)], dst, sem_ref)
        cp.start()
        cp.wait()

    if tail == 0:
        fetch(b * tb, tb, buf_ref)
    else:
        @pl.when(b < n_full)
        def _():
            fetch(b * tb, tb, buf_ref)

        # Last (ragged) batch block: copy only the in-bounds rows.  The
        # remaining buffer rows feed output rows that are out of range and
        # therefore discarded by the output BlockSpec.
        @pl.when(b == n_full)
        def _():
            fetch(n_full * tb, tail, buf_ref.at[pl.ds(0, tail)])

    if avg:
        t0 = buf_ref[:, 0, :].astype(jnp.float32)
        t1 = buf_ref[:, 1, :].astype(jnp.float32)
        out_ref[...] = ((t0 + t1) * 0.5).astype(out_ref.dtype)
    else:
        out_ref[...] = buf_ref[:, 0, :]


# ---------------------------------------------------------------------------
# Wrapper
# ---------------------------------------------------------------------------
def multimodal_pooler(token: jax.Array, modality: str, *,
                      block_bytes: int = _DEFAULT_BLOCK_BYTES) -> jax.Array:
    """token: [B, S, D] -> feature: [B, D] (same semantics as the nn.Module)."""
    B, S, D = token.shape
    itemsize = jnp.dtype(token.dtype).itemsize
    tb = _pick_tb(B, itemsize)
    batch_grid = pl.cdiv(B, tb)
    out_shape = jax.ShapeDtypeStruct((B, D), token.dtype)

    if modality == "text":
        d_tile = _pick_d_tile(D, batch_grid)
        d_grid = D // d_tile
        s_tile = _pick_s_tile(S, tb, d_tile, itemsize, block_bytes)
        seq_grid = pl.cdiv(S, s_tile)

        kernel = functools.partial(
            _text_pool_kernel,
            inv_s=float(1.0 / S),
            s_tile=s_tile,
            seq_len=S,
        )
        cost = pl.CostEstimate(
            flops=B * S * D,
            transcendentals=0,
            bytes_accessed=B * S * D * itemsize + B * D * itemsize,
        )
        return pl.pallas_call(
            kernel,
            out_shape=out_shape,
            grid=(batch_grid, d_grid, seq_grid),
            in_specs=[pl.BlockSpec((tb, s_tile, d_tile),
                                   lambda b, dd, s: (b, s, dd))],
            # Same output block across the sequence axis -> resident output,
            # written only on the last sequence step.
            out_specs=pl.BlockSpec((tb, d_tile), lambda b, dd, s: (b, dd)),
            scratch_shapes=[pltpu.VMEM((tb, d_tile), jnp.float32)],
            compiler_params=pltpu.CompilerParams(
                dimension_semantics=("parallel", "parallel", "arbitrary"),
                vmem_limit_bytes=_TEXT_VMEM_LIMIT_BYTES,
            ),
            cost_estimate=cost,
        )(token)

    if modality == "img":
        n_tok, avg = 1, False
    elif modality == "audio":
        n_tok, avg = 2, True
    else:
        raise ValueError(f"Unsupported modality: {modality}")

    n_full = B // tb
    tail = B - n_full * tb
    kernel = functools.partial(
        _leading_token_pool_kernel,
        tb=tb, n_tok=n_tok, n_full=n_full, tail=tail, avg=avg,
    )
    # TODO(synk): for production, fuse this trivial pooling into the producer
    # of `token` so even the n_tok*D bytes never round-trip through HBM.
    return pl.pallas_call(
        kernel,
        out_shape=out_shape,
        grid=(batch_grid,),
        in_specs=[pl.BlockSpec(memory_space=pl.ANY)],   # full token stays in HBM
        out_specs=pl.BlockSpec((tb, D), lambda b: (b, 0)),
        scratch_shapes=[
            pltpu.VMEM((tb, n_tok, D), token.dtype),
            pltpu.SemaphoreType.DMA,
        ],
        compiler_params=pltpu.CompilerParams(
            dimension_semantics=("parallel",),
        ),
    )(token)


# ---------------------------------------------------------------------------
# Reference (pure JAX, mirrors the PyTorch module) for verification
# ---------------------------------------------------------------------------
def _reference(token, modality):
    if modality == "text":
        return token.mean(axis=1)
    if modality == "img":
        return token[:, 0]
    if modality == "audio":
        return (token[:, 0] + token[:, 1]) / 2
    raise ValueError(modality)


if __name__ == "__main__":
    key = jax.random.PRNGKey(0)

    def check(token, modality, atol, rtol, **kw):
        out = jax.block_until_ready(multimodal_pooler(token, modality, **kw))
        ref = _reference(token, modality)
        assert out.shape == ref.shape, (modality, out.shape, ref.shape)
        o = out.astype(jnp.float32)
        r = ref.astype(jnp.float32)
        ok = bool(jnp.allclose(o, r, atol=atol, rtol=rtol))
        if not ok:
            print(f"MISMATCH modality={modality} shape={token.shape} "
                  f"dtype={token.dtype} max_err={float(jnp.max(jnp.abs(o - r)))}")
        return ok

    all_ok = True
    k0, k1, k2 = jax.random.split(key, 3)

    # Primary small-shape test (B=2, S=8, D=32), float32.
    tok_a = jax.random.normal(k0, (2, 8, 32), dtype=jnp.float32)
    for modality in ("text", "img", "audio"):
        all_ok &= check(tok_a, modality, 1e-5, 1e-5)

    # Tiling / tail coverage: B % tb != 0, S % s_tile != 0, lane-exact D.
    # (tiny block budget forces the sequence-tiled + masked reduction path
    # and the ragged batch-tail DMA path at small shapes)
    tok_b = jax.random.normal(k1, (10, 37, 128), dtype=jnp.float32)
    for modality in ("text", "img", "audio"):
        all_ok &= check(tok_b, modality, 1e-5, 1e-5, block_bytes=8 * 1024)

    # bf16 + hidden-dim split (batch_grid == 1, D % 256 == 0 -> two D blocks).
    tok_c = jax.random.normal(k2, (4, 16, 256), dtype=jnp.float32).astype(jnp.bfloat16)
    for modality in ("text", "img", "audio"):
        all_ok &= check(tok_c, modality, 5e-2, 5e-2)

    if all_ok:
        print("KERNEL_OK")
</pallas_src>

<mosaic_0001>
module attributes {stable_mosaic.version = 11 : i64} {
  func.func @_text_pool_kernel(%arg0: i32, %arg1: i32, %arg2: i32, %arg3: memref<2x8x32xf32, #tpu.memory_space<vmem>>, %arg4: memref<2x32xf32, #tpu.memory_space<vmem>>, %arg5: memref<2x32xf32, #tpu.memory_space<vmem>>) attributes {dimension_semantics = [#tpu.dimension_semantics<parallel>, #tpu.dimension_semantics<parallel>, #tpu.dimension_semantics<arbitrary>], iteration_bounds = array<i64: 1, 1, 1>, scalar_prefetch = 0 : i64, scratch_operands = 1 : i64, tpu.core_type = #tpu.core_type<tc>, window_params = [{transform_indices = @transform_0, window_bounds = array<i64: 2, 8, 32>}, {transform_indices = @transform_1, window_bounds = array<i64: 2, 32>}]} {
    %c0_i32 = arith.constant 0 : i32
    %0 = arith.cmpi eq, %arg2, %c0_i32 : i32
    %1 = arith.extui %0 : i1 to i32
    %c0_i32_0 = arith.constant 0 : i32
    %2 = arith.cmpi ne, %1, %c0_i32_0 : i32
    scf.if %2 {
      %cst_9 = arith.constant 0.000000e+00 : f32
      %11 = vector.broadcast %cst_9 : f32 to vector<2x32xf32>
      %c0_10 = arith.constant 0 : index
      %c0_11 = arith.constant 0 : index
      %12 = vector.load %arg5[%c0_10, %c0_11] : memref<2x32xf32, #tpu.memory_space<vmem>>, vector<2x32xf32>
      tpu.vector_store %arg5[%c0_10, %c0_11], %11 {strides = array<i32>} : memref<2x32xf32, #tpu.memory_space<vmem>>, vector<2x32xf32>,
    } else {
    }
    %c0 = arith.constant 0 : index
    %c0_1 = arith.constant 0 : index
    %3 = vector.load %arg5[%c0, %c0_1] : memref<2x32xf32, #tpu.memory_space<vmem>>, vector<2x32xf32>
    %c0_2 = arith.constant 0 : index
    %c0_3 = arith.constant 0 : index
    %c0_4 = arith.constant 0 : index
    %4 = vector.load %arg3[%c0_2, %c0_3, %c0_4] : memref<2x8x32xf32, #tpu.memory_space<vmem>>, vector<2x8x32xf32>
    %cst = arith.constant dense<0.000000e+00> : vector<2x32xf32>
    %5 = vector.multi_reduction <add>, %4, %cst [1] : vector<2x8x32xf32> to vector<2x32xf32>
    %6 = arith.addf %3, %5 : vector<2x32xf32>
    %c0_5 = arith.constant 0 : index
    %c0_6 = arith.constant 0 : index
    %7 = vector.load %arg5[%c0_5, %c0_6] : memref<2x32xf32, #tpu.memory_space<vmem>>, vector<2x32xf32>
    tpu.vector_store %arg5[%c0_5, %c0_6], %6 {strides = array<i32>} : memref<2x32xf32, #tpu.memory_space<vmem>>, vector<2x32xf32>,
    %c0_i32_7 = arith.constant 0 : i32
    %8 = arith.cmpi eq, %arg2, %c0_i32_7 : i32
    %9 = arith.extui %8 : i1 to i32
    %c0_i32_8 = arith.constant 0 : i32
    %10 = arith.cmpi ne, %9, %c0_i32_8 : i32
    scf.if %10 {
      %c0_9 = arith.constant 0 : index
      %c0_10 = arith.constant 0 : index
      %11 = vector.load %arg5[%c0_9, %c0_10] : memref<2x32xf32, #tpu.memory_space<vmem>>, vector<2x32xf32>
      %cst_11 = arith.constant 1.250000e-01 : f32
      %12 = vector.broadcast %cst_11 : f32 to vector<2x32xf32>
      %13 = arith.mulf %11, %12 : vector<2x32xf32>
      %c0_12 = arith.constant 0 : index
      %c0_13 = arith.constant 0 : index
      %14 = vector.load %arg4[%c0_12, %c0_13] : memref<2x32xf32, #tpu.memory_space<vmem>>, vector<2x32xf32>
      tpu.vector_store %arg4[%c0_12, %c0_13], %13 {strides = array<i32>} : memref<2x32xf32, #tpu.memory_space<vmem>>, vector<2x32xf32>,
    } else {
    }
    return
  }
  func.func @transform_0(%arg0: i32, %arg1: i32, %arg2: i32) -> (i32, i32, i32) {
    %c0_i32 = arith.constant 0 : i32
    return %arg0, %arg2, %arg1 : i32, i32, i32
  }
  func.func @transform_1(%arg0: i32, %arg1: i32, %arg2: i32) -> (i32, i32) {
    %c0_i32 = arith.constant 0 : i32
    return %arg0, %arg1 : i32, i32
  }
}

</mosaic_0001>

<llo_original>
// kernel: tpu_custom_call.1
$region0: #{tpu_custom_call.1}
  #allocation0 [shape = 'u32[]', space=smem, size = 0x4, offset = 0x4, fixed_abs, tag = 'smem constant byte address 0x4 - core index']
  #allocation1 [shape = 'u32[144,128]{1,0:T(1,128)}', space=vmem, size = 0x12000, scoped, tag = 'internal scratch']
  #allocation2 [shape = 'f32[2,32]{1,0:T(2,128)}', space=vmem, size = 0x400, scoped, tag = 'scratch operand']
  %s0 = inlined_call_operand.hbm [shape: f32[2,8,32], index: 0, kind: input, shape index: {}]
  %s1 = inlined_call_operand.hbm [shape: f32[2,32], index: 1, kind: output, shape index: {}]
  %s2 = sld [smem:[#allocation0]]
  $region26: #{tpu_custom_call.1} parent=0
    _
  %s4 = ssub.s32 1, %s2
  %s5 = scalar_select 0, %s4, %s2
  $region1: #{tpu_custom_call.1} parent=0
    #allocation3 [shape = 'u8[8192]{0}', space=vmem, size = 0x2000, scoped, tag = 'input window, operand 0, single buffered']
    #allocation4 [shape = 's32[1]{0}', space=sflag, size = 0x4, scoped, tag = 'scoped memory for tpu_custom_call.1']
    #allocation5 [shape = 's32[1]{0}', space=sflag, size = 0x4, scoped, tag = 'scoped memory for tpu_custom_call.1']
    #allocation6 [shape = 'u8[1024]{0}', space=vmem, size = 0x400, scoped, tag = 'output window, operand 0, single buffered']
    %6 = vsyncpa [#allocation4], 0
    %7 = vsyncpa [#allocation5], 0
    // Predicated region
    $region2: #{tpu_custom_call.1} parent=1 // pred_check
      _
    $region3: #{tpu_custom_call.1} parent=1 // pred_check_branch
      %9 = sbr.rel (0) target = $region5
    $region4: #{tpu_custom_call.1} parent=1 // pred_region
      %s11 = ssub.s32 256, 256
      %12 = vsyncadd [#allocation4], %s11
      %s13 = sshll.u32 [#allocation3], 4
      %s14 = int_to_ptr.vmem [resolvable:$true] %s13
      %19 = dma.hbm_to_vmem [thread:$0]  %s0, 256, %s14, [#allocation4], 128, 128, 8
    $region5: #{tpu_custom_call.1} parent=1 // pred_fallthru
      _
    // Predicated region
    $region6: #{tpu_custom_call.1} parent=1 // pred_check
      _
    $region7: #{tpu_custom_call.1} parent=1 // pred_check_branch
      %21 = sbr.rel (0) target = $region9
    $region8: #{tpu_custom_call.1} parent=1 // pred_region
      %22 = dma.done [#allocation4], 256
    $region9: #{tpu_custom_call.1} parent=1 // pred_fallthru
      _
    %p23 = scmp.eq.s32.totalorder 0, 0
    // Predicated region
    $region10: #{tpu_custom_call.1} parent=1 // pred_check
      %p24 = pneg %p23
    $region11: #{tpu_custom_call.1} parent=1 // pred_check_branch
      %26 = sbr.rel (%p24) target = $region13
    $region12: #{tpu_custom_call.1} parent=1 // pred_region
      %vm27 = vcmask 254976
      %28 = vst.msk [vmem:[#allocation2] sm:$0x3] %vm27, 0.0
    $region13: #{tpu_custom_call.1} parent=1 // pred_fallthru
      _
    %v29 = vld [vmem:[#allocation2] sm:$0x3]
    %v30 = vld [vmem:[#allocation3] sm:$0xff]
    %v31 = vld [vmem:[#allocation3 + $0x8] sm:$0xff]
    %vm32 = vcmask 261120
    %v33 = vsel %vm32, %v30, 0.0
    %v34 = vrot.slane %v33, 4
    %v35 = vadd.f32 %v33, %v34
    %v36 = vrot.slane %v35, 2
    %v37 = vadd.f32 %v35, %v36
    %v38 = vrot.slane %v37, 1
    %v39 = vadd.f32 %v37, %v38
    %v40 = vsel %vm32, %v31, 0.0
    %v41 = vrot.slane %v40, 4
    %v42 = vadd.f32 %v40, %v41
    %v43 = vrot.slane %v42, 2
    %v44 = vadd.f32 %v42, %v43
    %v45 = vrot.slane %v44, 1
    %v46 = vadd.f32 %v44, %v45
    %vm49 = vcmask 1041409
    %v50 = vsel %vm49, %v46, %v39
    %v52 = vadd.f32 %v29, %v50
    %vm53 = vcmask 254976
    %54 = vst.msk [vmem:[#allocation2] sm:$0x3] %vm53, %v52
    // Predicated region
    $region14: #{tpu_custom_call.1} parent=1 // pred_check
      %p55 = pneg %p23
    $region15: #{tpu_custom_call.1} parent=1 // pred_check_branch
      %57 = sbr.rel (%p55) target = $region17
    $region16: #{tpu_custom_call.1} parent=1 // pred_region
      %v58 = vld [vmem:[#allocation2] sm:$0x3]
      %v59 = vmul.f32 %v58, 0.125
      %60 = vst.msk [vmem:[#allocation6] sm:$0x3] %vm53, %v59
    $region17: #{tpu_custom_call.1} parent=1 // pred_fallthru
      _
    // Predicated region
    $region18: #{tpu_custom_call.1} parent=1 // pred_check
      _
    $region19: #{tpu_custom_call.1} parent=1 // pred_check_branch
      %62 = sbr.rel (0) target = $region21
    $region20: #{tpu_custom_call.1} parent=1 // pred_region
      %s64 = ssub.s32 32, 32
      %65 = vsyncadd [#allocation5], %s64
      %s67 = sshll.u32 [#allocation6], 4
      %s68 = int_to_ptr.vmem [resolvable:$true] %s67
      %70 = dma.vmem_to_hbm [thread:$0]  %s68, 32, %s1, [#allocation5]
    $region21: #{tpu_custom_call.1} parent=1 // pred_fallthru
      _
    // Predicated region
    $region22: #{tpu_custom_call.1} parent=1 // pred_check
      _
    $region23: #{tpu_custom_call.1} parent=1 // pred_check_branch
      %72 = sbr.rel (0) target = $region25
    $region24: #{tpu_custom_call.1} parent=1 // pred_region
      %73 = dma.done [#allocation5], 32
    $region25: #{tpu_custom_call.1} parent=1 // pred_fallthru
      _
    %74 = vsyncpa [#allocation4], 1
    %75 = vsyncpa [#allocation5], 1

</llo_original>
